<compile_context>
chip_gen: v5e
topology: v5e:2x2
jax: 0.10.0
libtpu: 0.0.40
codegen_flags: <defaults>
</compile_context>

<pallas_src>
import functools

import jax
import jax.numpy as jnp
import numpy as np
from jax.experimental import pallas as pl
from jax.experimental.pallas import tpu as pltpu

LANES = 128
SUBLANES = 8
STRIP = 128     # rows per inner strip (16 f32 vregs per live operand; no spill)


def _device_defaults():
    """Return (ncores for the parallel axis, target x+t bytes per block)."""
    kind = ""
    try:
        kind = jax.devices()[0].device_kind.lower()
    except Exception:
        pass
    # Only v7x exposes 2 TensorCores to a "parallel" grid axis; v5e/v6e have 1.
    ncores_hw = 2 if "v7" in kind else 1
    # v5e: 16 MiB default scoped-VMEM -> smaller blocks there.
    small_vmem = ("v5e" in kind) or ("v5 lite" in kind) or ("v5lite" in kind)
    pair_block_bytes = (4 << 20) if small_vmem else (8 << 20)
    return ncores_hw, pair_block_bytes


def _chi2_kernel(x_ref, t_ref, sum_ref, cnt_ref, *,
                 err0_sq, n_valid, tm, strip, blocks_per_core):
    p = pl.program_id(0)              # core / partial-output index
    i = pl.program_id(1)              # row-block index within this core's share
    blk = p * blocks_per_core + i     # UNclamped logical block id (for masking)

    @pl.when(i == 0)
    def _init():
        sum_ref[...] = jnp.zeros_like(sum_ref)
        cnt_ref[...] = jnp.zeros_like(cnt_ref)

    blk_elems = tm * LANES
    # NOTE(int32): for > 2**31 elements block offsets would need 64-bit math.
    rem0 = n_valid - blk * blk_elems  # real elements remaining at block start

    n_strips = tm // strip
    n_sub = strip // SUBLANES
    zero = jnp.zeros((SUBLANES, LANES), jnp.float32)

    def recip(a):
        # EUP approx reciprocal (free slot) + one Newton-Raphson refinement
        # (~1e-7 relative error) instead of the multi-VALU-op exact divide.
        r = pl.reciprocal(a, approx=True)
        return r * (2.0 - a * r)

    def load(k):
        r0 = pl.multiple_of(k * strip, strip)
        xs = x_ref[pl.ds(r0, strip), :].astype(jnp.float32)
        ts = t_ref[pl.ds(r0, strip), :].astype(jnp.float32)
        return xs, ts

    def strip_contrib(xs, ts, idx_mask):
        valid = jnp.logical_not(jnp.isnan(ts))
        if idx_mask is not None:
            valid = jnp.logical_and(valid, idx_mask)
        w = recip(xs + err0_sq)
        d = xs - ts                      # garbage/NaN slots are select-ed away
        loss = jnp.where(valid, w * d * d, 0.0)
        cnt = jnp.where(valid, 1.0, 0.0)
        # (strip,128) -> (strip//8, 8, 128) -> sum over leading axis: vreg-wise
        # VPU adds into an (8,128) partial (no XLU reduce in the hot loop).
        s = loss.reshape(n_sub, SUBLANES, LANES).sum(axis=0)
        c = cnt.reshape(n_sub, SUBLANES, LANES).sum(axis=0)
        return s, c

    # Fast path: every element of this block is real data -> NaN mask only.
    @pl.when(rem0 >= blk_elems)
    def _interior():
        def body(k, carry):
            s_acc, c_acc = carry
            xs, ts = load(k)
            s, c = strip_contrib(xs, ts, None)
            return s_acc + s, c_acc + c

        s_tot, c_tot = jax.lax.fori_loop(0, n_strips, body, (zero, zero))
        sum_ref[0, :, :] += s_tot
        cnt_ref[0, :, :] += c_tot

    # Slow path: the (single) ragged edge block -> extra flat-index mask.
    @pl.when(jnp.logical_and(rem0 > 0, rem0 < blk_elems))
    def _edge():
        lin = (jax.lax.broadcasted_iota(jnp.int32, (strip, LANES), 0) * LANES
               + jax.lax.broadcasted_iota(jnp.int32, (strip, LANES), 1))

        def body(k, carry):
            s_acc, c_acc = carry
            xs, ts = load(k)
            thr = rem0 - k * (strip * LANES)
            s, c = strip_contrib(xs, ts, lin < thr)
            return s_acc + s, c_acc + c

        s_tot, c_tot = jax.lax.fori_loop(0, n_strips, body, (zero, zero))
        sum_ref[0, :, :] += s_tot
        cnt_ref[0, :, :] += c_tot

    # Padded / duplicated grid steps (rem0 <= 0) contribute nothing: skipped.


def chi2_loss(inp, target, err0=0.0):
    """Pallas Chi2Loss: mean of 1/(x+err0^2) * (x-t)^2 over non-NaN targets."""
    err0_sq = float(err0) ** 2

    x = jnp.asarray(inp).reshape(-1)
    t = jnp.asarray(target).reshape(-1)
    # Keep native floating dtypes (bf16/f16/f32) for the DMA; cast in-kernel.
    if not jnp.issubdtype(x.dtype, jnp.floating):
        x = x.astype(jnp.float32)
    if not jnp.issubdtype(t.dtype, jnp.floating):
        t = t.astype(jnp.float32)

    def partial_jnp(xf, tf):
        xf = xf.astype(jnp.float32)
        tf = tf.astype(jnp.float32)
        valid = jnp.logical_not(jnp.isnan(tf))
        tsafe = jnp.where(valid, tf, 0.0)
        w = 1.0 / (xf + err0_sq)
        s = jnp.sum(jnp.where(valid, w * (xf - tsafe) ** 2, 0.0))
        c = jnp.sum(valid.astype(jnp.float32))
        return s, c

    n = x.shape[0]                       # true element count (static)
    n_main = (n // LANES) * LANES        # lane-aligned prefix handled in-kernel
    m = n_main // LANES

    if m < SUBLANES:
        # < 1024 elements: a kernel launch is pure overhead.
        s, c = partial_jnp(x, t)
        return s / c

    # Ragged tail (< 128 elements) folded in with plain jnp; the main part
    # needs NO jnp.pad.  When n % 128 == 0 (typical) the reshape is zero-copy.
    tail_sum = jnp.float32(0.0)
    tail_cnt = jnp.float32(0.0)
    if n_main < n:
        tail_sum, tail_cnt = partial_jnp(x[n_main:], t[n_main:])
        x = x[:n_main]   # may copy the main slab; unavoidable when n % 128 != 0
        t = t[:n_main]

    x2 = x.reshape(m, LANES)
    t2 = t.reshape(m, LANES)

    ncores_hw, pair_block_bytes = _device_defaults()
    bytes_per_row = LANES * (x2.dtype.itemsize + t2.dtype.itemsize)
    row_cap = max(SUBLANES,
                  (pair_block_bytes // bytes_per_row) // SUBLANES * SUBLANES)
    tm = max(SUBLANES, (min(m, row_cap) // SUBLANES) * SUBLANES)

    # Inner strip: largest divisor of tm among (128, 64, 32, 16, 8).
    strip = SUBLANES
    for cand in (STRIP, 64, 32, 16, 8):
        if tm % cand == 0:
            strip = cand
            break

    num_blocks = pl.cdiv(m, tm)            # real row blocks (last may be ragged)
    ncores = max(1, min(ncores_hw, num_blocks))
    bpc = pl.cdiv(num_blocks, ncores)      # blocks per core (grid axis 1)

    def in_map(p, i):
        # Clamp padded grid steps onto the last real block; the kernel skips
        # their contribution entirely (rem0 <= 0), so the result is unchanged.
        return (jnp.minimum(p * bpc + i, num_blocks - 1), 0)

    out_map = lambda p, i: (p, 0, 0)

    kernel = functools.partial(
        _chi2_kernel, err0_sq=err0_sq, n_valid=n_main, tm=tm, strip=strip,
        blocks_per_core=bpc)

    block_bytes = tm * bytes_per_row
    vmem_limit = int(2 * block_bytes + (4 << 20))   # double-buffered x+t blocks
    out_bytes = 2 * ncores * SUBLANES * LANES * 4
    cost = pl.CostEstimate(
        flops=10 * n_main,
        transcendentals=n_main,
        bytes_accessed=n_main * (x2.dtype.itemsize + t2.dtype.itemsize)
        + out_bytes)

    sums, cnts = pl.pallas_call(
        kernel,
        out_shape=(jax.ShapeDtypeStruct((ncores, SUBLANES, LANES), jnp.float32),
                   jax.ShapeDtypeStruct((ncores, SUBLANES, LANES), jnp.float32)),
        grid_spec=pltpu.PrefetchScalarGridSpec(
            num_scalar_prefetch=0,
            grid=(ncores, bpc),
            in_specs=[pl.BlockSpec((tm, LANES), in_map),
                      pl.BlockSpec((tm, LANES), in_map)],
            out_specs=(pl.BlockSpec((1, SUBLANES, LANES), out_map),
                       pl.BlockSpec((1, SUBLANES, LANES), out_map)),
        ),
        compiler_params=pltpu.CompilerParams(
            # v7x: row blocks shard across the two TensorCores; the reduction
            # axis stays "arbitrary" so each core's partial accumulates in VMEM.
            dimension_semantics=("parallel", "arbitrary"),
            vmem_limit_bytes=vmem_limit,
        ),
        cost_estimate=cost,
    )(x2, t2)

    # Tiny finalize: cross-lane reduce of the (ncores, 8, 128) partials + tail.
    total_sum = jnp.sum(sums) + tail_sum
    total_cnt = jnp.sum(cnts) + tail_cnt
    # (0/0 -> NaN when every target is NaN, same as the PyTorch reference.)
    return total_sum / total_cnt


def chi2_loss_ref(inp, target, err0=0.0):
    x = jnp.asarray(inp, jnp.float32)
    t = jnp.asarray(target, jnp.float32)
    w = 1.0 / (x + float(err0) ** 2)
    valid = jnp.logical_not(jnp.isnan(t))
    t_safe = jnp.where(valid, t, 0.0)
    loss = jnp.where(valid, w * (x - t_safe) ** 2, 0.0)
    return jnp.sum(loss) / jnp.sum(valid.astype(jnp.float32))


if __name__ == "__main__":
    key = jax.random.PRNGKey(0)
    k1, k2, k3, k4, k5 = jax.random.split(key, 5)

    err0 = 0.25

    # Primary case: NCHW-style input, n a multiple of 128 (zero-copy path).
    shape = (2, 4, 16, 16)
    # input strictly positive so 1/(input + err0^2) is finite with small err0
    inp = jax.random.uniform(k1, shape, jnp.float32, minval=0.5, maxval=2.0)
    target = jax.random.uniform(k2, shape, jnp.float32, minval=0.0, maxval=2.0)
    nan_mask = jax.random.bernoulli(k3, p=0.1, shape=shape)
    target = jnp.where(nan_mask, jnp.nan, target)

    out = jax.block_until_ready(chi2_loss(inp, target, err0=err0))
    ref = jax.block_until_ready(chi2_loss_ref(inp, target, err0=err0))
    assert np.isfinite(float(out))
    assert np.isclose(float(out), float(ref), rtol=1e-5, atol=1e-6), (
        float(out), float(ref))

    # Ragged case: exercises the masked edge block + jnp tail path.
    shape2 = (3, 5, 7, 11)   # 1155 elements: 9 kernel rows + 3-element tail
    inp2 = jax.random.uniform(k4, shape2, jnp.float32, minval=0.5, maxval=2.0)
    tgt2 = jax.random.uniform(k5, shape2, jnp.float32, minval=0.0, maxval=2.0)
    tgt2 = tgt2.at[0, 0, 0, :3].set(jnp.nan)

    out2 = jax.block_until_ready(chi2_loss(inp2, tgt2, err0=err0))
    ref2 = jax.block_until_ready(chi2_loss_ref(inp2, tgt2, err0=err0))
    assert np.isclose(float(out2), float(ref2), rtol=1e-5, atol=1e-6), (
        float(out2), float(ref2))

    print("KERNEL_OK")
</pallas_src>

<mosaic_0001>
module attributes {stable_mosaic.version = 11 : i64} {
  func.func @_chi2_kernel(%arg0: i32, %arg1: i32, %arg2: memref<16x128xf32, #tpu.memory_space<vmem>>, %arg3: memref<16x128xf32, #tpu.memory_space<vmem>>, %arg4: memref<1x8x128xf32, #tpu.memory_space<vmem>>, %arg5: memref<1x8x128xf32, #tpu.memory_space<vmem>>) attributes {dimension_semantics = [#tpu.dimension_semantics<parallel>, #tpu.dimension_semantics<arbitrary>], iteration_bounds = array<i64: 1, 1>, scalar_prefetch = 0 : i64, scratch_operands = 0 : i64, tpu.core_type = #tpu.core_type<tc>, window_params = [{transform_indices = @transform_0, window_bounds = array<i64: 16, 128>}, {transform_indices = @transform_1, window_bounds = array<i64: 16, 128>}, {transform_indices = @transform_2, window_bounds = array<i64: 1, 8, 128>}, {transform_indices = @transform_3, window_bounds = array<i64: 1, 8, 128>}]} {
    %c1_i32 = arith.constant 1 : i32
    %0 = arith.muli %arg0, %c1_i32 : i32
    %1 = arith.addi %0, %arg1 : i32
    %c0_i32 = arith.constant 0 : i32
    %2 = arith.cmpi eq, %arg1, %c0_i32 : i32
    %3 = arith.extui %2 : i1 to i32
    %c0_i32_0 = arith.constant 0 : i32
    %4 = arith.cmpi ne, %3, %c0_i32_0 : i32
    scf.if %4 {
      %cst_7 = arith.constant 0.000000e+00 : f32
      %16 = vector.broadcast %cst_7 : f32 to vector<1x8x128xf32>
      %c0 = arith.constant 0 : index
      %c0_8 = arith.constant 0 : index
      %c0_9 = arith.constant 0 : index
      %17 = vector.load %arg4[%c0, %c0_8, %c0_9] : memref<1x8x128xf32, #tpu.memory_space<vmem>>, vector<1x8x128xf32>
      tpu.vector_store %arg4[%c0, %c0_8, %c0_9], %16 {strides = array<i32>} : memref<1x8x128xf32, #tpu.memory_space<vmem>>, vector<1x8x128xf32>,
      %cst_10 = arith.constant 0.000000e+00 : f32
      %18 = vector.broadcast %cst_10 : f32 to vector<1x8x128xf32>
      %c0_11 = arith.constant 0 : index
      %c0_12 = arith.constant 0 : index
      %c0_13 = arith.constant 0 : index
      %19 = vector.load %arg5[%c0_11, %c0_12, %c0_13] : memref<1x8x128xf32, #tpu.memory_space<vmem>>, vector<1x8x128xf32>
      tpu.vector_store %arg5[%c0_11, %c0_12, %c0_13], %18 {strides = array<i32>} : memref<1x8x128xf32, #tpu.memory_space<vmem>>, vector<1x8x128xf32>,
    } else {
    }
    %c2048_i32 = arith.constant 2048 : i32
    %5 = arith.muli %1, %c2048_i32 : i32
    %c2048_i32_1 = arith.constant 2048 : i32
    %6 = arith.subi %c2048_i32_1, %5 : i32
    %cst = arith.constant 0.000000e+00 : f32
    %7 = vector.broadcast %cst : f32 to vector<8x128xf32>
    %c2048_i32_2 = arith.constant 2048 : i32
    %8 = arith.cmpi sge, %6, %c2048_i32_2 : i32
    %9 = arith.extui %8 : i1 to i32
    %c0_i32_3 = arith.constant 0 : i32
    %10 = arith.cmpi ne, %9, %c0_i32_3 : i32
    scf.if %10 {
      %c0_i32_7 = arith.constant 0 : i32
      %c16_i32 = arith.constant 16 : i32
      %16 = arith.muli %c0_i32_7, %c16_i32 : i32
      %17 = tpu.assume_multiple %16, 16 : i32
      %18 = arith.index_cast %17 : i32 to index
      %c0 = arith.constant 0 : index
      %19 = vector.load %arg2[%18, %c0] : memref<16x128xf32, #tpu.memory_space<vmem>>, vector<16x128xf32>
      %20 = arith.index_cast %17 : i32 to index
      %c0_8 = arith.constant 0 : index
      %21 = vector.load %arg3[%20, %c0_8] : memref<16x128xf32, #tpu.memory_space<vmem>>, vector<16x128xf32>
      %22 = arith.cmpf one, %21, %21 : vector<16x128xf32>
      %cst_9 = arith.constant dense<true> : vector<16x128xi1>
      %23 = arith.xori %22, %cst_9 : vector<16x128xi1>
      %cst_10 = arith.constant 6.250000e-02 : f32
      %24 = vector.broadcast %cst_10 : f32 to vector<16x128xf32>
      %25 = arith.addf %19, %24 : vector<16x128xf32>
      %26 = tpu.reciprocal %25 {approx = true} : vector<16x128xf32> -> vector<16x128xf32>
      %27 = arith.mulf %25, %26 : vector<16x128xf32>
      %cst_11 = arith.constant 2.000000e+00 : f32
      %28 = vector.broadcast %cst_11 : f32 to vector<16x128xf32>
      %29 = arith.subf %28, %27 : vector<16x128xf32>
      %30 = arith.mulf %26, %29 : vector<16x128xf32>
      %31 = arith.subf %19, %21 : vector<16x128xf32>
      %32 = arith.mulf %30, %31 : vector<16x128xf32>
      %33 = arith.mulf %32, %31 : vector<16x128xf32>
      %cst_12 = arith.constant 0.000000e+00 : f32
      %34 = vector.broadcast %cst_12 : f32 to vector<16x128xf32>
      %35 = arith.select %23, %33, %34 : vector<16x128xi1>, vector<16x128xf32>
      %cst_13 = arith.constant 1.000000e+00 : f32
      %cst_14 = arith.constant 0.000000e+00 : f32
      %36 = vector.broadcast %cst_13 : f32 to vector<16x128xf32>
      %37 = vector.broadcast %cst_14 : f32 to vector<16x128xf32>
      %38 = arith.select %23, %36, %37 : vector<16x128xi1>, vector<16x128xf32>
      %39 = vector.shape_cast %35 : vector<16x128xf32> to vector<2x8x128xf32>
      %cst_15 = arith.constant dense<0.000000e+00> : vector<8x128xf32>
      %40 = vector.multi_reduction <add>, %39, %cst_15 [0] : vector<2x8x128xf32> to vector<8x128xf32>
      %41 = vector.shape_cast %38 : vector<16x128xf32> to vector<2x8x128xf32>
      %cst_16 = arith.constant dense<0.000000e+00> : vector<8x128xf32>
      %42 = vector.multi_reduction <add>, %41, %cst_16 [0] : vector<2x8x128xf32> to vector<8x128xf32>
      %43 = arith.addf %7, %40 : vector<8x128xf32>
      %44 = arith.addf %7, %42 : vector<8x128xf32>
      %c1_i32_17 = arith.constant 1 : i32
      %c0_18 = arith.constant 0 : index
      %c0_19 = arith.constant 0 : index
      %c0_20 = arith.constant 0 : index
      %45 = vector.load %arg4[%c0_18, %c0_19, %c0_20] : memref<1x8x128xf32, #tpu.memory_space<vmem>>, vector<1x8x128xf32>
      %46 = vector.shape_cast %45 : vector<1x8x128xf32> to vector<8x128xf32>
      %47 = arith.addf %46, %43 : vector<8x128xf32>
      %c0_21 = arith.constant 0 : index
      %c0_22 = arith.constant 0 : index
      %c0_23 = arith.constant 0 : index
      %48 = vector.load %arg4[%c0_21, %c0_22, %c0_23] : memref<1x8x128xf32, #tpu.memory_space<vmem>>, vector<1x8x128xf32>
      %49 = vector.shape_cast %48 : vector<1x8x128xf32> to vector<8x128xf32>
      %50 = vector.shape_cast %47 : vector<8x128xf32> to vector<1x8x128xf32>
      tpu.vector_store %arg4[%c0_21, %c0_22, %c0_23], %50 {strides = array<i32>} : memref<1x8x128xf32, #tpu.memory_space<vmem>>, vector<1x8x128xf32>,
      %c0_24 = arith.constant 0 : index
      %c0_25 = arith.constant 0 : index
      %c0_26 = arith.constant 0 : index
      %51 = vector.load %arg5[%c0_24, %c0_25, %c0_26] : memref<1x8x128xf32, #tpu.memory_space<vmem>>, vector<1x8x128xf32>
      %52 = vector.shape_cast %51 : vector<1x8x128xf32> to vector<8x128xf32>
      %53 = arith.addf %52, %44 : vector<8x128xf32>
      %c0_27 = arith.constant 0 : index
      %c0_28 = arith.constant 0 : index
      %c0_29 = arith.constant 0 : index
      %54 = vector.load %arg5[%c0_27, %c0_28, %c0_29] : memref<1x8x128xf32, #tpu.memory_space<vmem>>, vector<1x8x128xf32>
      %55 = vector.shape_cast %54 : vector<1x8x128xf32> to vector<8x128xf32>
      %56 = vector.shape_cast %53 : vector<8x128xf32> to vector<1x8x128xf32>
      tpu.vector_store %arg5[%c0_27, %c0_28, %c0_29], %56 {strides = array<i32>} : memref<1x8x128xf32, #tpu.memory_space<vmem>>, vector<1x8x128xf32>,
    } else {
    }
    %c0_i32_4 = arith.constant 0 : i32
    %11 = arith.cmpi sgt, %6, %c0_i32_4 : i32
    %c2048_i32_5 = arith.constant 2048 : i32
    %12 = arith.cmpi slt, %6, %c2048_i32_5 : i32
    %13 = arith.andi %11, %12 : i1
    %14 = arith.extui %13 : i1 to i32
    %c0_i32_6 = arith.constant 0 : i32
    %15 = arith.cmpi ne, %14, %c0_i32_6 : i32
    scf.if %15 {
      %16 = tpu.iota {dimensions = array<i32: 0>} : vector<16x128xi32>
      %c128_i32 = arith.constant 128 : i32
      %17 = vector.broadcast %c128_i32 : i32 to vector<16x128xi32>
      %18 = arith.muli %16, %17 : vector<16x128xi32>
      %19 = tpu.iota {dimensions = array<i32: 1>} : vector<16x128xi32>
      %20 = arith.addi %18, %19 : vector<16x128xi32>
      %c0_i32_7 = arith.constant 0 : i32
      %c16_i32 = arith.constant 16 : i32
      %21 = arith.muli %c0_i32_7, %c16_i32 : i32
      %22 = tpu.assume_multiple %21, 16 : i32
      %23 = arith.index_cast %22 : i32 to index
      %c0 = arith.constant 0 : index
      %24 = vector.load %arg2[%23, %c0] : memref<16x128xf32, #tpu.memory_space<vmem>>, vector<16x128xf32>
      %25 = arith.index_cast %22 : i32 to index
      %c0_8 = arith.constant 0 : index
      %26 = vector.load %arg3[%25, %c0_8] : memref<16x128xf32, #tpu.memory_space<vmem>>, vector<16x128xf32>
      %c2048_i32_9 = arith.constant 2048 : i32
      %27 = arith.muli %c0_i32_7, %c2048_i32_9 : i32
      %28 = arith.subi %6, %27 : i32
      %29 = vector.broadcast %28 : i32 to vector<16x128xi32>
      %30 = arith.cmpi slt, %20, %29 : vector<16x128xi32>
      %31 = arith.cmpf one, %26, %26 : vector<16x128xf32>
      %cst_10 = arith.constant dense<true> : vector<16x128xi1>
      %32 = arith.xori %31, %cst_10 : vector<16x128xi1>
      %33 = arith.andi %32, %30 : vector<16x128xi1>
      %cst_11 = arith.constant 6.250000e-02 : f32
      %34 = vector.broadcast %cst_11 : f32 to vector<16x128xf32>
      %35 = arith.addf %24, %34 : vector<16x128xf32>
      %36 = tpu.reciprocal %35 {approx = true} : vector<16x128xf32> -> vector<16x128xf32>
      %37 = arith.mulf %35, %36 : vector<16x128xf32>
      %cst_12 = arith.constant 2.000000e+00 : f32
      %38 = vector.broadcast %cst_12 : f32 to vector<16x128xf32>
      %39 = arith.subf %38, %37 : vector<16x128xf32>
      %40 = arith.mulf %36, %39 : vector<16x128xf32>
      %41 = arith.subf %24, %26 : vector<16x128xf32>
      %42 = arith.mulf %40, %41 : vector<16x128xf32>
      %43 = arith.mulf %42, %41 : vector<16x128xf32>
      %cst_13 = arith.constant 0.000000e+00 : f32
      %44 = vector.broadcast %cst_13 : f32 to vector<16x128xf32>
      %45 = arith.select %33, %43, %44 : vector<16x128xi1>, vector<16x128xf32>
      %cst_14 = arith.constant 1.000000e+00 : f32
      %cst_15 = arith.constant 0.000000e+00 : f32
      %46 = vector.broadcast %cst_14 : f32 to vector<16x128xf32>
      %47 = vector.broadcast %cst_15 : f32 to vector<16x128xf32>
      %48 = arith.select %33, %46, %47 : vector<16x128xi1>, vector<16x128xf32>
      %49 = vector.shape_cast %45 : vector<16x128xf32> to vector<2x8x128xf32>
      %cst_16 = arith.constant dense<0.000000e+00> : vector<8x128xf32>
      %50 = vector.multi_reduction <add>, %49, %cst_16 [0] : vector<2x8x128xf32> to vector<8x128xf32>
      %51 = vector.shape_cast %48 : vector<16x128xf32> to vector<2x8x128xf32>
      %cst_17 = arith.constant dense<0.000000e+00> : vector<8x128xf32>
      %52 = vector.multi_reduction <add>, %51, %cst_17 [0] : vector<2x8x128xf32> to vector<8x128xf32>
      %53 = arith.addf %7, %50 : vector<8x128xf32>
      %54 = arith.addf %7, %52 : vector<8x128xf32>
      %c1_i32_18 = arith.constant 1 : i32
      %c0_19 = arith.constant 0 : index
      %c0_20 = arith.constant 0 : index
      %c0_21 = arith.constant 0 : index
      %55 = vector.load %arg4[%c0_19, %c0_20, %c0_21] : memref<1x8x128xf32, #tpu.memory_space<vmem>>, vector<1x8x128xf32>
      %56 = vector.shape_cast %55 : vector<1x8x128xf32> to vector<8x128xf32>
      %57 = arith.addf %56, %53 : vector<8x128xf32>
      %c0_22 = arith.constant 0 : index
      %c0_23 = arith.constant 0 : index
      %c0_24 = arith.constant 0 : index
      %58 = vector.load %arg4[%c0_22, %c0_23, %c0_24] : memref<1x8x128xf32, #tpu.memory_space<vmem>>, vector<1x8x128xf32>
      %59 = vector.shape_cast %58 : vector<1x8x128xf32> to vector<8x128xf32>
      %60 = vector.shape_cast %57 : vector<8x128xf32> to vector<1x8x128xf32>
      tpu.vector_store %arg4[%c0_22, %c0_23, %c0_24], %60 {strides = array<i32>} : memref<1x8x128xf32, #tpu.memory_space<vmem>>, vector<1x8x128xf32>,
      %c0_25 = arith.constant 0 : index
      %c0_26 = arith.constant 0 : index
      %c0_27 = arith.constant 0 : index
      %61 = vector.load %arg5[%c0_25, %c0_26, %c0_27] : memref<1x8x128xf32, #tpu.memory_space<vmem>>, vector<1x8x128xf32>
      %62 = vector.shape_cast %61 : vector<1x8x128xf32> to vector<8x128xf32>
      %63 = arith.addf %62, %54 : vector<8x128xf32>
      %c0_28 = arith.constant 0 : index
      %c0_29 = arith.constant 0 : index
      %c0_30 = arith.constant 0 : index
      %64 = vector.load %arg5[%c0_28, %c0_29, %c0_30] : memref<1x8x128xf32, #tpu.memory_space<vmem>>, vector<1x8x128xf32>
      %65 = vector.shape_cast %64 : vector<1x8x128xf32> to vector<8x128xf32>
      %66 = vector.shape_cast %63 : vector<8x128xf32> to vector<1x8x128xf32>
      tpu.vector_store %arg5[%c0_28, %c0_29, %c0_30], %66 {strides = array<i32>} : memref<1x8x128xf32, #tpu.memory_space<vmem>>, vector<1x8x128xf32>,
    } else {
    }
    return
  }
  func.func @transform_0(%arg0: i32, %arg1: i32) -> (i32, i32) {
    %c1_i32 = arith.constant 1 : i32
    %0 = arith.muli %arg0, %c1_i32 : i32
    %1 = arith.addi %0, %arg1 : i32
    %c0_i32 = arith.constant 0 : i32
    %2 = arith.minsi %1, %c0_i32 : i32
    %c0_i32_0 = arith.constant 0 : i32
    %c0_i32_1 = arith.constant 0 : i32
    return %2, %c0_i32_0 : i32, i32
  }
  func.func @transform_1(%arg0: i32, %arg1: i32) -> (i32, i32) {
    %c1_i32 = arith.constant 1 : i32
    %0 = arith.muli %arg0, %c1_i32 : i32
    %1 = arith.addi %0, %arg1 : i32
    %c0_i32 = arith.constant 0 : i32
    %2 = arith.minsi %1, %c0_i32 : i32
    %c0_i32_0 = arith.constant 0 : i32
    %c0_i32_1 = arith.constant 0 : i32
    return %2, %c0_i32_0 : i32, i32
  }
  func.func @transform_2(%arg0: i32, %arg1: i32) -> (i32, i32, i32) {
    %c0_i32 = arith.constant 0 : i32
    %c0_i32_0 = arith.constant 0 : i32
    %c0_i32_1 = arith.constant 0 : i32
    return %arg0, %c0_i32, %c0_i32_0 : i32, i32, i32
  }
  func.func @transform_3(%arg0: i32, %arg1: i32) -> (i32, i32, i32) {
    %c0_i32 = arith.constant 0 : i32
    %c0_i32_0 = arith.constant 0 : i32
    %c0_i32_1 = arith.constant 0 : i32
    return %arg0, %c0_i32, %c0_i32_0 : i32, i32, i32
  }
}

</mosaic_0001>

<llo_original>
// kernel: tpu_custom_call.1
$region0: #{tpu_custom_call.1}
  #allocation0 [shape = 'u32[]', space=smem, size = 0x4, offset = 0x4, fixed_abs, tag = 'smem constant byte address 0x4 - core index']
  #allocation1 [shape = 'u32[72,128]{1,0:T(1,128)}', space=vmem, size = 0x9000, scoped, tag = 'internal scratch']
  %s0 = inlined_call_operand.hbm [shape: f32[16,128], index: 0, kind: input, shape index: {}]
  %s1 = inlined_call_operand.hbm [shape: f32[16,128], index: 1, kind: input, shape index: {}]
  %s2 = inlined_call_operand.hbm [shape: f32[1,8,128], index: 2, kind: output, shape index: {0}]
  %s3 = inlined_call_operand.hbm [shape: f32[1,8,128], index: 3, kind: output, shape index: {1}]
  %4 = xla_tuple %s2, %s3
  %s5 = sld [smem:[#allocation0]]
  $region46: #{tpu_custom_call.1} parent=0
    _
  %s7 = ssub.s32 1, %s5
  %s8 = scalar_select 0, %s7, %s5
  $region1: #{tpu_custom_call.1} parent=0
    #allocation2 [shape = 'u8[8192]{0}', space=vmem, size = 0x2000, scoped, tag = 'input window, operand 0, single buffered']
    #allocation3 [shape = 's32[1]{0}', space=sflag, size = 0x4, scoped, tag = 'scoped memory for tpu_custom_call.1']
    #allocation4 [shape = 's32[1]{0}', space=sflag, size = 0x4, scoped, tag = 'scoped memory for tpu_custom_call.1']
    #allocation5 [shape = 'u8[8192]{0}', space=vmem, size = 0x2000, scoped, tag = 'input window, operand 1, single buffered']
    #allocation6 [shape = 's32[1]{0}', space=sflag, size = 0x4, scoped, tag = 'scoped memory for tpu_custom_call.1']
    #allocation7 [shape = 'u8[4096]{0}', space=vmem, size = 0x1000, scoped, tag = 'output window, operand 0, single buffered']
    #allocation8 [shape = 'u8[4096]{0}', space=vmem, size = 0x1000, scoped, tag = 'output window, operand 1, single buffered']
    #allocation9 [shape = 's32[1]{0}', space=sflag, size = 0x4, scoped, tag = 'scoped memory for tpu_custom_call.1']
    %9 = vsyncpa [#allocation3], 0
    %10 = vsyncpa [#allocation6], 0
    %11 = vsyncpa [#allocation4], 0
    %12 = vsyncpa [#allocation9], 0
    // Predicated region
    $region2: #{tpu_custom_call.1} parent=1 // pred_check
      _
    $region3: #{tpu_custom_call.1} parent=1 // pred_check_branch
      %14 = sbr.rel (0) target = $region5
    $region4: #{tpu_custom_call.1} parent=1 // pred_region
      %s15 = sadd.s32 0, 0
      %p16 = scmp.lt.s32.totalorder %s15, 0
      %s17 = scalar_select %p16, %s15, 0
      %s18 = smul.u32 2, %s17
      %20 = vsyncadd [#allocation3], 0
      %s21 = smul.addr %s18, 8
      %s22 = scalar_lea.hbm %s0, %s21
      %s23 = sshll.u32 %s22, 4
      %s24 = int_to_ptr.hbm [resolvable:$true] %s23
      %s25 = sshll.u32 [#allocation2], 4
      %s26 = int_to_ptr.vmem [resolvable:$true] %s25
      %31 = dma.hbm_to_vmem [thread:$0]  %s24, 256, %s26, [#allocation3], 128, 128, 8
    $region5: #{tpu_custom_call.1} parent=1 // pred_fallthru
      _
    // Predicated region
    $region6: #{tpu_custom_call.1} parent=1 // pred_check
      _
    $region7: #{tpu_custom_call.1} parent=1 // pred_check_branch
      %33 = sbr.rel (0) target = $region9
    $region8: #{tpu_custom_call.1} parent=1 // pred_region
      %s34 = sadd.s32 0, 0
      %p35 = scmp.lt.s32.totalorder %s34, 0
      %s36 = scalar_select %p35, %s34, 0
      %s37 = smul.u32 2, %s36
      %39 = vsyncadd [#allocation6], 0
      %s40 = smul.addr %s37, 8
      %s41 = scalar_lea.hbm %s1, %s40
      %s42 = sshll.u32 %s41, 4
      %s43 = int_to_ptr.hbm [resolvable:$true] %s42
      %s44 = sshll.u32 [#allocation5], 4
      %s45 = int_to_ptr.vmem [resolvable:$true] %s44
      %50 = dma.hbm_to_vmem [thread:$0]  %s43, 256, %s45, [#allocation6], 128, 128, 8
    $region9: #{tpu_custom_call.1} parent=1 // pred_fallthru
      _
    // Predicated region
    $region10: #{tpu_custom_call.1} parent=1 // pred_check
      _
    $region11: #{tpu_custom_call.1} parent=1 // pred_check_branch
      %52 = sbr.rel (0) target = $region13
    $region12: #{tpu_custom_call.1} parent=1 // pred_region
      %54 = dma.done [#allocation3], 256
    $region13: #{tpu_custom_call.1} parent=1 // pred_fallthru
      _
    // Predicated region
    $region14: #{tpu_custom_call.1} parent=1 // pred_check
      _
    $region15: #{tpu_custom_call.1} parent=1 // pred_check_branch
      %56 = sbr.rel (0) target = $region17
    $region16: #{tpu_custom_call.1} parent=1 // pred_region
      %58 = dma.done [#allocation6], 256
    $region17: #{tpu_custom_call.1} parent=1 // pred_fallthru
      _
    %s59 = sadd.s32 0, 0
    %p60 = scmp.lt.s32.totalorder %s59, 0
    %s61 = scalar_select %p60, %s59, 0
    %s62 = smul.u32 2, %s61
    %s63 = sadd.s32 0, 0
    %p64 = scmp.lt.s32.totalorder %s63, 0
    %s65 = scalar_select %p64, %s63, 0
    %s66 = smul.u32 2, %s65
    %s67 = sadd.s32 0, 0
    %p68 = scmp.eq.s32.totalorder 0, 0
    // Predicated region
    $region18: #{tpu_custom_call.1} parent=1 // pred_check
      %p69 = pneg %p68
    $region19: #{tpu_custom_call.1} parent=1 // pred_check_branch
      %71 = sbr.rel (%p69) target = $region21
    $region20: #{tpu_custom_call.1} parent=1 // pred_region
      %72 = vst [vmem:[#allocation7] sm:$0xff] 0.0
      %73 = vst [vmem:[#allocation8] sm:$0xff] 0.0
    $region21: #{tpu_custom_call.1} parent=1 // pred_fallthru
      _
    %s74 = smul.u32 %s67, 2048
    %s75 = ssub.s32 2048, %s74
    %p76 = scmp.ge.s32.totalorder %s75, 2048
    // Predicated region
    $region22: #{tpu_custom_call.1} parent=1 // pred_check
      %p77 = pneg %p76
    $region23: #{tpu_custom_call.1} parent=1 // pred_check_branch
      %79 = sbr.rel (%p77) target = $region25
    $region24: #{tpu_custom_call.1} parent=1 // pred_region
      %v80 = vld [vmem:[#allocation2] sm:$0xff]
      %v81 = vld [vmem:[#allocation2 + $0x8] sm:$0xff]
      %v82 = vld [vmem:[#allocation5] sm:$0xff]
      %v83 = vld [vmem:[#allocation5 + $0x8] sm:$0xff]
      %vm84 = vcmp.ne.f32.partialorder %v82, %v82
      %vm85 = vcmp.ne.f32.partialorder %v83, %v83
      %vm86 = vmxor %vm84, 1
      %vm87 = vmxor %vm85, 1
      %v88 = vadd.f32 %v80, 0.0625
      %v89 = vadd.f32 %v81, 0.0625
      %v90 = vrcp.pop %v88
      %v91 = vrcp.pop %v89
      %v92 = vmul.f32 %v88, %v90
      %v93 = vmul.f32 %v89, %v91
      %v94 = vsub.f32 2.0, %v92
      %v95 = vsub.f32 2.0, %v93
      %v96 = vmul.f32 %v90, %v94
      %v97 = vmul.f32 %v91, %v95
      %v98 = vsub.f32 %v80, %v82
      %v99 = vsub.f32 %v81, %v83
      %v100 = vmul.f32 %v96, %v98
      %v101 = vmul.f32 %v97, %v99
      %v102 = vmul.f32 %v100, %v98
      %v103 = vmul.f32 %v101, %v99
      %v104 = vsel %vm86, %v102, 0.0
      %v105 = vsel %vm87, %v103, 0.0
      %v106 = vsel %vm86, 1.0, 0.0
      %v107 = vsel %vm87, 1.0, 0.0
      %v108 = vadd.f32 %v104, %v105
      %v109 = vadd.f32 %v106, %v107
      %v110 = vadd.f32 %v108, 0.0
      %v111 = vadd.f32 %v109, 0.0
      %v112 = vld [vmem:[#allocation7] sm:$0xff]
      %v113 = vadd.f32 %v112, %v110
      %114 = vst [vmem:[#allocation7] sm:$0xff] %v113
      %v115 = vld [vmem:[#allocation8] sm:$0xff]
      %v116 = vadd.f32 %v115, %v111
      %117 = vst [vmem:[#allocation8] sm:$0xff] %v116
    $region25: #{tpu_custom_call.1} parent=1 // pred_fallthru
      _
    %p118 = scmp.gt.s32.totalorder %s75, 0
    %p119 = scmp.lt.s32.totalorder %s75, 2048
    %p120 = pnand %p118, %p119
    %p121 = pneg %p120
    // Predicated region
    $region26: #{tpu_custom_call.1} parent=1 // pred_check
      _
    $region27: #{tpu_custom_call.1} parent=1 // pred_check_branch
      %123 = sbr.rel (%p120) target = $region29
    $region28: #{tpu_custom_call.1} parent=1 // pred_region
      %v124 = vlaneseq
      %v125 = vshrl.u32 %v124, 7
      %v126 = vadd.s32 %v125, 8
      %v127 = vmul.u32 %v125, 128
      %v128 = vmul.u32 %v126, 128
      %v129 = vlaneseq
      %v130 = vand.u32 %v129, 127
      %v131 = vadd.s32 %v127, %v130
      %v132 = vadd.s32 %v128, %v130
      %v133 = vld [vmem:[#allocation2] sm:$0xff]
      %v134 = vld [vmem:[#allocation2 + $0x8] sm:$0xff]
      %v135 = vld [vmem:[#allocation5] sm:$0xff]
      %v136 = vld [vmem:[#allocation5 + $0x8] sm:$0xff]
      %v137 = vstv %s75
      %vm138 = vcmp.lt.s32.totalorder %v131, %v137
      %vm139 = vcmp.lt.s32.totalorder %v132, %v137
      %vm140 = vcmp.ne.f32.partialorder %v135, %v135
      %vm141 = vcmp.ne.f32.partialorder %v136, %v136
      %vm142 = vmxor %vm140, 1
      %vm143 = vmxor %vm141, 1
      %vm144 = vmand %vm142, %vm138
      %vm145 = vmand %vm143, %vm139
      %v146 = vadd.f32 %v133, 0.0625
      %v147 = vadd.f32 %v134, 0.0625
      %v148 = vrcp.pop %v146
      %v149 = vrcp.pop %v147
      %v150 = vmul.f32 %v146, %v148
      %v151 = vmul.f32 %v147, %v149
      %v152 = vsub.f32 2.0, %v150
      %v153 = vsub.f32 2.0, %v151
      %v154 = vmul.f32 %v148, %v152
      %v155 = vmul.f32 %v149, %v153
      %v156 = vsub.f32 %v133, %v135
      %v157 = vsub.f32 %v134, %v136
      %v158 = vmul.f32 %v154, %v156
      %v159 = vmul.f32 %v155, %v157
      %v160 = vmul.f32 %v158, %v156
      %v161 = vmul.f32 %v159, %v157
      %v162 = vsel %vm144, %v160, 0.0
      %v163 = vsel %vm145, %v161, 0.0
      %v164 = vsel %vm144, 1.0, 0.0
      %v165 = vsel %vm145, 1.0, 0.0
      %v166 = vadd.f32 %v162, %v163
      %v167 = vadd.f32 %v164, %v165
      %v168 = vadd.f32 %v166, 0.0
      %v169 = vadd.f32 %v167, 0.0
      %v170 = vld [vmem:[#allocation7] sm:$0xff]
      %v171 = vadd.f32 %v170, %v168
      %172 = vst [vmem:[#allocation7] sm:$0xff] %v171
      %v173 = vld [vmem:[#allocation8] sm:$0xff]
      %v174 = vadd.f32 %v173, %v169
      %175 = vst [vmem:[#allocation8] sm:$0xff] %v174
    $region29: #{tpu_custom_call.1} parent=1 // pred_fallthru
      _
    // Predicated region
    $region30: #{tpu_custom_call.1} parent=1 // pred_check
      _
    $region31: #{tpu_custom_call.1} parent=1 // pred_check_branch
      %177 = sbr.rel (0) target = $region33
    $region32: #{tpu_custom_call.1} parent=1 // pred_region
      %179 = vsyncadd [#allocation4], 0
      %s181 = sshll.u32 [#allocation7], 4
      %s182 = int_to_ptr.vmem [resolvable:$true] %s181
      %s183 = sshll.u32 %s2, 4
      %s184 = int_to_ptr.hbm [resolvable:$true] %s183
      %186 = dma.vmem_to_hbm [thread:$0]  %s182, 128, %s184, [#allocation4]
    $region33: #{tpu_custom_call.1} parent=1 // pred_fallthru
      _
    // Predicated region
    $region34: #{tpu_custom_call.1} parent=1 // pred_check
      _
    $region35: #{tpu_custom_call.1} parent=1 // pred_check_branch
      %188 = sbr.rel (0) target = $region37
    $region36: #{tpu_custom_call.1} parent=1 // pred_region
      %190 = vsyncadd [#allocation9], 0
      %s192 = sshll.u32 [#allocation8], 4
      %s193 = int_to_ptr.vmem [resolvable:$true] %s192
      %s194 = sshll.u32 %s3, 4
      %s195 = int_to_ptr.hbm [resolvable:$true] %s194
      %197 = dma.vmem_to_hbm [thread:$0]  %s193, 128, %s195, [#allocation9]
    $region37: #{tpu_custom_call.1} parent=1 // pred_fallthru
      _
    // Predicated region
    $region38: #{tpu_custom_call.1} parent=1 // pred_check
      _
    $region39: #{tpu_custom_call.1} parent=1 // pred_check_branch
      %199 = sbr.rel (0) target = $region41
    $region40: #{tpu_custom_call.1} parent=1 // pred_region
      %201 = dma.done [#allocation4], 128
    $region41: #{tpu_custom_call.1} parent=1 // pred_fallthru
      _
    // Predicated region
    $region42: #{tpu_custom_call.1} parent=1 // pred_check
      _
    $region43: #{tpu_custom_call.1} parent=1 // pred_check_branch
      %203 = sbr.rel (0) target = $region45
    $region44: #{tpu_custom_call.1} parent=1 // pred_region
      %205 = dma.done [#allocation9], 128
    $region45: #{tpu_custom_call.1} parent=1 // pred_fallthru
      _
    %206 = vsyncpa [#allocation3], 1
    %207 = vsyncpa [#allocation6], 1
    %208 = vsyncpa [#allocation4], 1
    %209 = vsyncpa [#allocation9], 1

</llo_original>
